<compile_context>
chip_gen: v6e
topology: v6e:2x2x1
jax: 0.10.0
libtpu: 0.0.40
codegen_flags: <defaults>
</compile_context>

<pallas_src>
import numpy as np
import jax
import jax.numpy as jnp
from jax.experimental import pallas as pl
from jax.experimental.pallas import tpu as pltpu

K = 3                 # transposed-conv kernel size
H_IN = W_IN = 3       # module's implied input spatial size
H_OUT = W_OUT = 5     # (3 - 1) * 1 + 3 = 5


def _fused_kernel(p_ref, o_ref):
    # p_ref: (19,) f32 SMEM -- [ x.ravel() (9) | w.ravel() (9) | b (1) ]
    # o_ref: (2,)  f32 SMEM -- adaptive_avg_pool2d((1, 2)) result (flattened)
    #
    # All work stays on the (free) scalar path: no vregs, no XLU, no MXU,
    # no padding, no intermediate 5x5 map.  ~20 scalar flops total.
    # Input column sums (x[i, j] is at flat index 3*i + j).
    xc0 = p_ref[0] + p_ref[3] + p_ref[6]
    xc1 = p_ref[1] + p_ref[4] + p_ref[7]
    xc2 = p_ref[2] + p_ref[5] + p_ref[8]

    # Weight column sums (w[i, j] is at flat index 9 + 3*i + j).
    wc0 = p_ref[9] + p_ref[12] + p_ref[15]
    wc1 = p_ref[10] + p_ref[13] + p_ref[16]
    wc2 = p_ref[11] + p_ref[14] + p_ref[17]
    w_all = wc0 + wc1 + wc2

    b = p_ref[18]
    inv15 = jnp.float32(1.0 / 15.0)
    # MaxPool1d(kernel_size=1, stride=1) is the identity -> nothing to do.
    o_ref[0] = b + (xc0 * w_all + xc1 * (wc0 + wc1) + xc2 * wc0) * inv15
    o_ref[1] = b + (xc0 * wc2 + xc1 * (wc1 + wc2) + xc2 * w_all) * inv15


@jax.jit
def model_forward(x, w, b):
    """x: (1,1,3,3); w: (1,1,3,3) (PyTorch in,out,kH,kW); b: (1,) -> (1,1,1,2)."""
    # Single packed operand -> single inbound SMEM DMA.
    packed = jnp.concatenate([
        x.reshape(-1).astype(jnp.float32),
        w.reshape(-1).astype(jnp.float32),
        b.reshape(-1).astype(jnp.float32),
    ])
    out = pl.pallas_call(
        _fused_kernel,
        out_shape=jax.ShapeDtypeStruct((2,), jnp.float32),
        in_specs=[pl.BlockSpec(memory_space=pltpu.MemorySpace.SMEM)],
        out_specs=pl.BlockSpec(memory_space=pltpu.MemorySpace.SMEM),
    )(packed)
    return out.reshape(1, 1, 1, 2)


if __name__ == "__main__":
    key = jax.random.PRNGKey(0)
    kx, kw, kb = jax.random.split(key, 3)

    # Input implied by the module: (1, 1, 3, 3)
    x1 = jax.random.normal(kx, (1, 1, H_IN, W_IN), dtype=jnp.float32)

    # Deterministic parameter init (PyTorch-style uniform bound 1/sqrt(fan))
    bound = 1.0 / float(np.sqrt(1 * K * K))
    w = jax.random.uniform(kw, (1, 1, K, K), minval=-bound, maxval=bound,
                           dtype=jnp.float32)
    b = jax.random.uniform(kb, (1,), minval=-bound, maxval=bound,
                           dtype=jnp.float32)

    out = jax.block_until_ready(model_forward(x1, w, b))

    # Pure-numpy reference of the PyTorch forward pass.
    xn = np.asarray(x1)[0, 0]
    wn = np.asarray(w)[0, 0]
    bn = float(np.asarray(b)[0])
    y = np.zeros((H_OUT, W_OUT), np.float32)
    for m in range(H_IN):
        for n in range(W_IN):
            y[m:m + K, n:n + K] += xn[m, n] * wn      # ConvTranspose2d scatter-add
    y += bn
    # MaxPool1d(1) == identity; adaptive_avg_pool2d -> (1, 2):
    #   H bin [0,5); W bins [0,3) and [2,5), each averaging 15 elements.
    ref = np.array([[[[y[:, 0:3].mean(), y[:, 2:5].mean()]]]], np.float32)

    assert out.shape == (1, 1, 1, 2)
    assert np.allclose(np.asarray(out), ref, rtol=1e-5, atol=1e-5)
    print("KERNEL_OK")
</pallas_src>

<mosaic_0001>
module attributes {stable_mosaic.version = 11 : i64} {
  func.func @_fused_kernel(%arg0: memref<19xf32, #tpu.memory_space<smem>>, %arg1: memref<2xf32, #tpu.memory_space<smem>>) attributes {dimension_semantics = [], scalar_prefetch = 0 : i64, scratch_operands = 0 : i64, tpu.core_type = #tpu.core_type<tc>} {
    %c0 = arith.constant 0 : index
    %0 = memref.load %arg0[%c0] : memref<19xf32, #tpu.memory_space<smem>>
    %c3 = arith.constant 3 : index
    %1 = memref.load %arg0[%c3] : memref<19xf32, #tpu.memory_space<smem>>
    %2 = arith.addf %0, %1 : f32
    %c6 = arith.constant 6 : index
    %3 = memref.load %arg0[%c6] : memref<19xf32, #tpu.memory_space<smem>>
    %4 = arith.addf %2, %3 : f32
    %c1 = arith.constant 1 : index
    %5 = memref.load %arg0[%c1] : memref<19xf32, #tpu.memory_space<smem>>
    %c4 = arith.constant 4 : index
    %6 = memref.load %arg0[%c4] : memref<19xf32, #tpu.memory_space<smem>>
    %7 = arith.addf %5, %6 : f32
    %c7 = arith.constant 7 : index
    %8 = memref.load %arg0[%c7] : memref<19xf32, #tpu.memory_space<smem>>
    %9 = arith.addf %7, %8 : f32
    %c2 = arith.constant 2 : index
    %10 = memref.load %arg0[%c2] : memref<19xf32, #tpu.memory_space<smem>>
    %c5 = arith.constant 5 : index
    %11 = memref.load %arg0[%c5] : memref<19xf32, #tpu.memory_space<smem>>
    %12 = arith.addf %10, %11 : f32
    %c8 = arith.constant 8 : index
    %13 = memref.load %arg0[%c8] : memref<19xf32, #tpu.memory_space<smem>>
    %14 = arith.addf %12, %13 : f32
    %c9 = arith.constant 9 : index
    %15 = memref.load %arg0[%c9] : memref<19xf32, #tpu.memory_space<smem>>
    %c12 = arith.constant 12 : index
    %16 = memref.load %arg0[%c12] : memref<19xf32, #tpu.memory_space<smem>>
    %17 = arith.addf %15, %16 : f32
    %c15 = arith.constant 15 : index
    %18 = memref.load %arg0[%c15] : memref<19xf32, #tpu.memory_space<smem>>
    %19 = arith.addf %17, %18 : f32
    %c10 = arith.constant 10 : index
    %20 = memref.load %arg0[%c10] : memref<19xf32, #tpu.memory_space<smem>>
    %c13 = arith.constant 13 : index
    %21 = memref.load %arg0[%c13] : memref<19xf32, #tpu.memory_space<smem>>
    %22 = arith.addf %20, %21 : f32
    %c16 = arith.constant 16 : index
    %23 = memref.load %arg0[%c16] : memref<19xf32, #tpu.memory_space<smem>>
    %24 = arith.addf %22, %23 : f32
    %c11 = arith.constant 11 : index
    %25 = memref.load %arg0[%c11] : memref<19xf32, #tpu.memory_space<smem>>
    %c14 = arith.constant 14 : index
    %26 = memref.load %arg0[%c14] : memref<19xf32, #tpu.memory_space<smem>>
    %27 = arith.addf %25, %26 : f32
    %c17 = arith.constant 17 : index
    %28 = memref.load %arg0[%c17] : memref<19xf32, #tpu.memory_space<smem>>
    %29 = arith.addf %27, %28 : f32
    %30 = arith.addf %19, %24 : f32
    %31 = arith.addf %30, %29 : f32
    %c18 = arith.constant 18 : index
    %32 = memref.load %arg0[%c18] : memref<19xf32, #tpu.memory_space<smem>>
    %33 = arith.mulf %4, %31 : f32
    %34 = arith.addf %19, %24 : f32
    %35 = arith.mulf %9, %34 : f32
    %36 = arith.addf %33, %35 : f32
    %37 = arith.mulf %14, %19 : f32
    %38 = arith.addf %36, %37 : f32
    %cst = arith.constant 0.0666666701 : f32
    %39 = arith.mulf %38, %cst : f32
    %40 = arith.addf %32, %39 : f32
    %c0_0 = arith.constant 0 : index
    %41 = memref.load %arg1[%c0_0] : memref<2xf32, #tpu.memory_space<smem>>
    memref.store %40, %arg1[%c0_0] : memref<2xf32, #tpu.memory_space<smem>>
    %42 = arith.mulf %4, %29 : f32
    %43 = arith.addf %24, %29 : f32
    %44 = arith.mulf %9, %43 : f32
    %45 = arith.addf %42, %44 : f32
    %46 = arith.mulf %14, %31 : f32
    %47 = arith.addf %45, %46 : f32
    %cst_1 = arith.constant 0.0666666701 : f32
    %48 = arith.mulf %47, %cst_1 : f32
    %49 = arith.addf %32, %48 : f32
    %c1_2 = arith.constant 1 : index
    %50 = memref.load %arg1[%c1_2] : memref<2xf32, #tpu.memory_space<smem>>
    memref.store %49, %arg1[%c1_2] : memref<2xf32, #tpu.memory_space<smem>>
    return
  }
}

</mosaic_0001>

<llo_original>
// kernel: model_forward.1
$region0: #{model_forward.1}
  #allocation0 [shape = 'u32[]', space=smem, size = 0x4, offset = 0x4, fixed_abs, tag = 'smem constant byte address 0x4 - core index']
  #allocation1 [shape = 'u32[144,128]{1,0:T(1,128)}', space=vmem, size = 0x12000, scoped, tag = 'internal scratch']
  %s0 = inlined_call_operand.vmem [shape: f32[19], index: 0, kind: input, shape index: {}]
  %s1 = inlined_call_operand.hbm [shape: f32[2], index: 1, kind: output, shape index: {}]
  %s2 = sld [smem:[#allocation0]]
  $region18: #{model_forward.1} parent=0
    _
  %s4 = ssub.s32 1, %s2
  %s5 = scalar_select 0, %s4, %s2
  $region1: #{model_forward.1} parent=0
    #allocation2 [shape = 'u8[512]{0}', space=smem, size = 0x200, scoped, tag = 'input window, operand 0, single buffered']
    #allocation3 [shape = 's32[1]{0}', space=sflag, size = 0x4, scoped, tag = 'scoped memory for model_forward.1']
    #allocation4 [shape = 's32[1]{0}', space=sflag, size = 0x4, scoped, tag = 'scoped memory for model_forward.1']
    #allocation5 [shape = 'u8[512]{0}', space=smem, size = 0x200, scoped, tag = 'output window, operand 0, single buffered']
    %6 = vsyncpa [#allocation4], 0
    %7 = vsyncpa [#allocation3], 0
    // Predicated region
    $region2: #{model_forward.1} parent=1 // pred_check
      _
    $region3: #{model_forward.1} parent=1 // pred_check_branch
      %9 = sbr.rel (0) target = $region5
    $region4: #{model_forward.1} parent=1 // pred_region
      %s11 = ssub.s32 16, 16
      %12 = vsyncadd [#allocation4], %s11
      %s14 = sshll.u32 %s0, 4
      %s15 = int_to_ptr.vmem [resolvable:$true] %s14
      %17 = dma.vmem_to_smem %s15, 16, [#allocation2], [#allocation4]
    $region5: #{model_forward.1} parent=1 // pred_fallthru
      _
    // Predicated region
    $region6: #{model_forward.1} parent=1 // pred_check
      _
    $region7: #{model_forward.1} parent=1 // pred_check_branch
      %19 = sbr.rel (0) target = $region9
    $region8: #{model_forward.1} parent=1 // pred_region
      %20 = dma.done [#allocation4], 16
    $region9: #{model_forward.1} parent=1 // pred_fallthru
      _
    %21 = sfence
    %s22 = sld [smem:[#allocation2]]
    %s23 = sld [smem:[#allocation2 + $0x3]]
    %s24 = sadd.f32 %s22, %s23
    %s25 = sld [smem:[#allocation2 + $0x6]]
    %s26 = sadd.f32 %s24, %s25
    %s27 = sld [smem:[#allocation2 + $0x1]]
    %s28 = sld [smem:[#allocation2 + $0x4]]
    %s29 = sadd.f32 %s27, %s28
    %s30 = sld [smem:[#allocation2 + $0x7]]
    %s31 = sadd.f32 %s29, %s30
    %s32 = sld [smem:[#allocation2 + $0x2]]
    %s33 = sld [smem:[#allocation2 + $0x5]]
    %s34 = sadd.f32 %s32, %s33
    %s35 = sld [smem:[#allocation2 + $0x8]]
    %s36 = sadd.f32 %s34, %s35
    %s37 = sld [smem:[#allocation2 + $0x9]]
    %s38 = sld [smem:[#allocation2 + $0xc]]
    %s39 = sadd.f32 %s37, %s38
    %s40 = sld [smem:[#allocation2 + $0xf]]
    %s41 = sadd.f32 %s39, %s40
    %s42 = sld [smem:[#allocation2 + $0xa]]
    %s43 = sld [smem:[#allocation2 + $0xd]]
    %s44 = sadd.f32 %s42, %s43
    %s45 = sld [smem:[#allocation2 + $0x10]]
    %s46 = sadd.f32 %s44, %s45
    %s47 = sld [smem:[#allocation2 + $0xb]]
    %s48 = sld [smem:[#allocation2 + $0xe]]
    %s49 = sadd.f32 %s47, %s48
    %s50 = sld [smem:[#allocation2 + $0x11]]
    %s51 = sadd.f32 %s49, %s50
    %s52 = sadd.f32 %s41, %s46
    %s53 = sadd.f32 %s52, %s51
    %s54 = sld [smem:[#allocation2 + $0x12]]
    %s55 = smul.f32 %s26, %s53
    %s56 = smul.f32 %s31, %s52
    %s57 = sadd.f32 %s55, %s56
    %s58 = smul.f32 %s36, %s41
    %s59 = sadd.f32 %s57, %s58
    %s60 = smul.f32 %s59, 0.06666667
    %s61 = sadd.f32 %s54, %s60
    %s62 = scalar_lea.smem [#allocation5], 0
    %63 = sst [smem:[%s62]] %s61
    %s64 = smul.f32 %s26, %s51
    %s65 = sadd.f32 %s46, %s51
    %s66 = smul.f32 %s31, %s65
    %s67 = sadd.f32 %s64, %s66
    %s68 = smul.f32 %s36, %s53
    %s69 = sadd.f32 %s67, %s68
    %s70 = smul.f32 %s69, 0.06666667
    %s71 = sadd.f32 %s54, %s70
    %s72 = scalar_lea.smem [#allocation5], 1
    %73 = sst [smem:[%s72]] %s71
    // Predicated region
    $region10: #{model_forward.1} parent=1 // pred_check
      _
    $region11: #{model_forward.1} parent=1 // pred_check_branch
      %75 = sbr.rel (0) target = $region13
    $region12: #{model_forward.1} parent=1 // pred_region
      %s77 = ssub.s32 16, 16
      %78 = vsyncadd [#allocation3], %s77
      %81 = dma.smem_to_hbm [#allocation5], 16, %s1, [#allocation3]
    $region13: #{model_forward.1} parent=1 // pred_fallthru
      _
    // Predicated region
    $region14: #{model_forward.1} parent=1 // pred_check
      _
    $region15: #{model_forward.1} parent=1 // pred_check_branch
      %83 = sbr.rel (0) target = $region17
    $region16: #{model_forward.1} parent=1 // pred_region
      %84 = dma.done [#allocation3], 16
    $region17: #{model_forward.1} parent=1 // pred_fallthru
      _
    %85 = sfence
    %86 = vsyncpa [#allocation3], 1
    %87 = vsyncpa [#allocation4], 1

</llo_original>
